<compile_context>
chip_gen: v7x
topology: tpu7x:2x2x1
jax: 0.10.0
libtpu: 0.0.40
codegen_flags: <defaults>
</compile_context>

<pallas_src>
import functools

import jax
import jax.numpy as jnp
from jax.experimental import pallas as pl
from jax.experimental.pallas import tpu as pltpu

BN_EPS = 1e-5
LANE = 128          # pad every hidden/output feature dim to this many lanes
N_LAYERS = 5
TILE_B_CAP = 512    # batch-tile cap: big enough to amortise per-step overhead,
                    # small enough that B > 512 still yields >=2 tiles (v7x 2xTC)


def _round_up(a, m):
    return (a + m - 1) // m * m


# ----------------------------------------------------------------------------
# Kernel
# ----------------------------------------------------------------------------
def mlp_kernel(x_ref, w_ref, b_ref, o_ref, *, n_feature):
    """x_ref: (TILE_B, F) f32, w_ref: (5,128,128) bf16, b_ref: (5,1,128) f32,
    o_ref: (TILE_B, 128) bf16."""
    h = x_ref[...].astype(jnp.bfloat16)                      # (TILE_B, F) bf16

    # Layer 0: only the first n_feature rows of the padded weight are nonzero;
    # n_feature (=16) is a static, sublane-aligned slice.
    z = jnp.dot(h, w_ref[0, :n_feature, :],
                preferred_element_type=jnp.float32) + b_ref[0]
    h = jnp.maximum(z, 0.0).astype(jnp.bfloat16)

    # Hidden layers 1..3: dot (bf16 MXU, f32 acc) + bias + ReLU (BN folded in).
    # Dropout (eval mode) == identity.
    for i in range(1, N_LAYERS - 1):
        z = jnp.dot(h, w_ref[i], preferred_element_type=jnp.float32) + b_ref[i]
        h = jnp.maximum(z, 0.0).astype(jnp.bfloat16)

    # Output layer: no activation; lane-dense (TILE_B, 128) bf16 store.
    out = jnp.dot(h, w_ref[N_LAYERS - 1],
                  preferred_element_type=jnp.float32) + b_ref[N_LAYERS - 1]
    o_ref[...] = out.astype(o_ref.dtype)


# ----------------------------------------------------------------------------
# Parameter construction (synthetic, mirrors the torch module's shapes)
# ----------------------------------------------------------------------------
def init_params(key, n_feature, n_hidden, n_output):
    dims = [n_feature, n_hidden, n_hidden // 2, n_hidden // 4, n_hidden // 8, n_output]
    params = []
    k = key
    for li in range(N_LAYERS):
        fan_in, fan_out = dims[li], dims[li + 1]
        k, kw, kb = jax.random.split(k, 3)
        bound = 1.0 / jnp.sqrt(fan_in)
        # Stored as (in, out) -> transpose of torch's (out, in).
        w = jax.random.uniform(kw, (fan_in, fan_out), jnp.float32, -bound, bound)
        b = jax.random.uniform(kb, (1, fan_out), jnp.float32, -bound, bound)
        params.append((w, b))

    bn_params = []
    for li in range(N_LAYERS - 1):
        h = dims[li + 1]
        k, kg, kbt, km, kv = jax.random.split(k, 5)
        gamma = 1.0 + 0.1 * jax.random.normal(kg, (1, h), jnp.float32)
        beta = 0.1 * jax.random.normal(kbt, (1, h), jnp.float32)
        mu = 0.1 * jax.random.normal(km, (1, h), jnp.float32)
        var = jnp.abs(1.0 + 0.1 * jax.random.normal(kv, (1, h), jnp.float32))
        bn_params.append((gamma, beta, mu, var))
    return params, bn_params


def _fold_and_pack(params, bn_params):
    """Fold eval-mode BN into the following Linear, zero-pad to 128 lanes, stack."""
    eff = [(params[0][0], params[0][1])]
    for li in range(N_LAYERS - 1):
        gamma, beta, mu, var = bn_params[li]
        s = gamma * jax.lax.rsqrt(var + BN_EPS)        # (1, H_li)
        t = beta - mu * s                              # (1, H_li)
        w_next, b_next = params[li + 1]
        w_eff = s.reshape(-1, 1) * w_next              # (H_li, H_next)
        b_eff = b_next + t @ w_next                    # (1, H_next)
        eff.append((w_eff, b_eff))

    w_stack = jnp.zeros((N_LAYERS, LANE, LANE), jnp.float32)
    b_stack = jnp.zeros((N_LAYERS, 1, LANE), jnp.float32)
    for li, (w, b) in enumerate(eff):
        fi, fo = w.shape
        w_stack = w_stack.at[li, :fi, :fo].set(w)
        b_stack = b_stack.at[li, 0, :fo].set(b[0])
    return w_stack.astype(jnp.bfloat16), b_stack       # bf16 weights, f32 biases


# ----------------------------------------------------------------------------
# Wrapper
# ----------------------------------------------------------------------------
@functools.partial(jax.jit, static_argnames=("n_output",))
def _mlp_forward_packed(x, w_stack, b_stack, n_output):
    B, F = x.shape

    # Batch tile: multiple of 16 sublanes (bf16 packing), capped at 512 so
    # per-step overhead is amortised while keeping >=2 tiles for large B.
    tile_b = min(TILE_B_CAP, _round_up(B, 16))
    b_pad = _round_up(B, tile_b)
    grid = (b_pad // tile_b,)

    # Only the batch axis is padded (small); the 16-wide feature axis is passed
    # as-is — no 128-lane padding pass through HBM.
    x_in = x if b_pad == B else jnp.pad(x, ((0, b_pad - B), (0, 0)))

    flops = 2 * b_pad * LANE * (F + (N_LAYERS - 1) * LANE)
    bytes_accessed = (
        b_pad * F * x_in.dtype.itemsize        # input
        + w_stack.size * 2 + b_stack.size * 4  # resident params
        + b_pad * LANE * 2                     # bf16 output
    )

    out_pad = pl.pallas_call(
        functools.partial(mlp_kernel, n_feature=F),
        out_shape=jax.ShapeDtypeStruct((b_pad, LANE), jnp.bfloat16),
        grid_spec=pltpu.PrefetchScalarGridSpec(
            num_scalar_prefetch=0,
            grid=grid,
            in_specs=[
                # x tile marches over batch; double-buffered by Pallas.
                # (tile_b, F): tile_b % 8 == 0, F equals the full array dim.
                pl.BlockSpec((tile_b, F), lambda b: (b, 0)),
                # Stacked weights / biases: constant index_map -> VMEM-resident.
                pl.BlockSpec((N_LAYERS, LANE, LANE), lambda b: (0, 0, 0)),
                pl.BlockSpec((N_LAYERS, 1, LANE), lambda b: (0, 0, 0)),
            ],
            out_specs=pl.BlockSpec((tile_b, LANE), lambda b: (b, 0)),
        ),
        compiler_params=pltpu.CompilerParams(
            dimension_semantics=("parallel",),     # shard batch tiles across TCs
        ),
        cost_estimate=pl.CostEstimate(
            flops=flops, transcendentals=0, bytes_accessed=bytes_accessed
        ),
    )(x_in, w_stack, b_stack)

    # Slice away batch / lane padding; hand back f32 like the torch module.
    return out_pad[:B, :n_output].astype(jnp.float32)


def mlp_forward(x, params, bn_params):
    n_output = params[N_LAYERS - 1][0].shape[1]
    w_stack, b_stack = _fold_and_pack(params, bn_params)
    return _mlp_forward_packed(x, w_stack, b_stack, n_output)


# ----------------------------------------------------------------------------
# Pure-JAX f32 reference (unfolded, unpadded) for sanity checking.
# ----------------------------------------------------------------------------
def mlp_reference(x, params, bn_params):
    h = x.astype(jnp.float32)
    for li in range(N_LAYERS - 1):
        w, b = params[li]
        g, bt, mu, v = bn_params[li]
        h = jnp.maximum(h @ w + b, 0.0)
        h = (h - mu) / jnp.sqrt(v + BN_EPS) * g + bt
    w, b = params[N_LAYERS - 1]
    return h @ w + b


if __name__ == "__main__":
    n_feature, n_hidden, n_output = 16, 32, 3
    batch = 8

    key = jax.random.PRNGKey(0)
    kx, kp = jax.random.split(key)
    x = jax.random.normal(kx, (batch, n_feature), jnp.float32)
    params, bn_params = init_params(kp, n_feature, n_hidden, n_output)

    out = mlp_forward(x, params, bn_params)
    out = jax.block_until_ready(out)

    ref = mlp_reference(x, params, bn_params)
    assert out.shape == (batch, n_output)
    # bf16 MXU matmuls + bf16 output store -> bf16-appropriate tolerance.
    assert jnp.allclose(out, ref, atol=5e-2, rtol=5e-2), "mismatch vs reference"

    print("KERNEL_OK")
</pallas_src>

<mosaic_0001>
module attributes {stable_mosaic.version = 11 : i64} {
  func.func @mlp_kernel(%arg0: i32, %arg1: memref<16x16xf32, #tpu.memory_space<vmem>>, %arg2: memref<5x128x128xbf16, #tpu.memory_space<vmem>>, %arg3: memref<5x1x128xf32, #tpu.memory_space<vmem>>, %arg4: memref<16x128xbf16, #tpu.memory_space<vmem>>) attributes {dimension_semantics = [#tpu.dimension_semantics<parallel>], iteration_bounds = array<i64: 1>, scalar_prefetch = 0 : i64, scratch_operands = 0 : i64, tpu.core_type = #tpu.core_type<tc>, window_params = [{transform_indices = @transform_0, window_bounds = array<i64: 16, 16>}, {pipeline_mode = #tpu.pipeline_mode<synchronous>, transform_indices = @transform_1, window_bounds = array<i64: 5, 128, 128>}, {pipeline_mode = #tpu.pipeline_mode<synchronous>, transform_indices = @transform_2, window_bounds = array<i64: 5, 1, 128>}, {transform_indices = @transform_3, window_bounds = array<i64: 16, 128>}]} {
    %c0 = arith.constant 0 : index
    %c0_0 = arith.constant 0 : index
    %0 = vector.load %arg1[%c0, %c0_0] : memref<16x16xf32, #tpu.memory_space<vmem>>, vector<16x16xf32>
    %1 = arith.truncf %0 : vector<16x16xf32> to vector<16x16xbf16>
    %c0_1 = arith.constant 0 : index
    %c0_2 = arith.constant 0 : index
    %c0_3 = arith.constant 0 : index
    %2 = vector.load %arg2[%c0_1, %c0_2, %c0_3] : memref<5x128x128xbf16, #tpu.memory_space<vmem>>, vector<1x16x128xbf16>
    %3 = vector.shape_cast %2 : vector<1x16x128xbf16> to vector<16x128xbf16>
    %cst = arith.constant dense<0.000000e+00> : vector<16x128xf32>
    %4 = tpu.matmul %1, %3, %cst {dimension_numbers = #tpu.dot_dimension_numbers<[1], [0], [0], [1], [0, 0, 1, 1], [], []>} : vector<16x16xbf16>, vector<16x128xbf16>, vector<16x128xf32> -> vector<16x128xf32>
    %c0_4 = arith.constant 0 : index
    %c0_5 = arith.constant 0 : index
    %c0_6 = arith.constant 0 : index
    %5 = vector.load %arg3[%c0_4, %c0_5, %c0_6] : memref<5x1x128xf32, #tpu.memory_space<vmem>>, vector<1x1x128xf32>
    %6 = vector.shape_cast %5 : vector<1x1x128xf32> to vector<1x128xf32>
    %7 = vector.broadcast %6 : vector<1x128xf32> to vector<16x128xf32>
    %8 = arith.addf %4, %7 : vector<16x128xf32>
    %cst_7 = arith.constant 0.000000e+00 : f32
    %9 = vector.broadcast %cst_7 : f32 to vector<16x128xf32>
    %10 = arith.maximumf %8, %9 : vector<16x128xf32>
    %11 = arith.truncf %10 : vector<16x128xf32> to vector<16x128xbf16>
    %c1 = arith.constant 1 : index
    %c0_8 = arith.constant 0 : index
    %c0_9 = arith.constant 0 : index
    %12 = vector.load %arg2[%c1, %c0_8, %c0_9] : memref<5x128x128xbf16, #tpu.memory_space<vmem>>, vector<1x128x128xbf16>
    %13 = vector.shape_cast %12 : vector<1x128x128xbf16> to vector<128x128xbf16>
    %cst_10 = arith.constant dense<0.000000e+00> : vector<16x128xf32>
    %14 = tpu.matmul %11, %13, %cst_10 {dimension_numbers = #tpu.dot_dimension_numbers<[1], [0], [0], [1], [0, 0, 1, 1], [], []>} : vector<16x128xbf16>, vector<128x128xbf16>, vector<16x128xf32> -> vector<16x128xf32>
    %c1_11 = arith.constant 1 : index
    %c0_12 = arith.constant 0 : index
    %c0_13 = arith.constant 0 : index
    %15 = vector.load %arg3[%c1_11, %c0_12, %c0_13] : memref<5x1x128xf32, #tpu.memory_space<vmem>>, vector<1x1x128xf32>
    %16 = vector.shape_cast %15 : vector<1x1x128xf32> to vector<1x128xf32>
    %17 = vector.broadcast %16 : vector<1x128xf32> to vector<16x128xf32>
    %18 = arith.addf %14, %17 : vector<16x128xf32>
    %cst_14 = arith.constant 0.000000e+00 : f32
    %19 = vector.broadcast %cst_14 : f32 to vector<16x128xf32>
    %20 = arith.maximumf %18, %19 : vector<16x128xf32>
    %21 = arith.truncf %20 : vector<16x128xf32> to vector<16x128xbf16>
    %c2 = arith.constant 2 : index
    %c0_15 = arith.constant 0 : index
    %c0_16 = arith.constant 0 : index
    %22 = vector.load %arg2[%c2, %c0_15, %c0_16] : memref<5x128x128xbf16, #tpu.memory_space<vmem>>, vector<1x128x128xbf16>
    %23 = vector.shape_cast %22 : vector<1x128x128xbf16> to vector<128x128xbf16>
    %cst_17 = arith.constant dense<0.000000e+00> : vector<16x128xf32>
    %24 = tpu.matmul %21, %23, %cst_17 {dimension_numbers = #tpu.dot_dimension_numbers<[1], [0], [0], [1], [0, 0, 1, 1], [], []>} : vector<16x128xbf16>, vector<128x128xbf16>, vector<16x128xf32> -> vector<16x128xf32>
    %c2_18 = arith.constant 2 : index
    %c0_19 = arith.constant 0 : index
    %c0_20 = arith.constant 0 : index
    %25 = vector.load %arg3[%c2_18, %c0_19, %c0_20] : memref<5x1x128xf32, #tpu.memory_space<vmem>>, vector<1x1x128xf32>
    %26 = vector.shape_cast %25 : vector<1x1x128xf32> to vector<1x128xf32>
    %27 = vector.broadcast %26 : vector<1x128xf32> to vector<16x128xf32>
    %28 = arith.addf %24, %27 : vector<16x128xf32>
    %cst_21 = arith.constant 0.000000e+00 : f32
    %29 = vector.broadcast %cst_21 : f32 to vector<16x128xf32>
    %30 = arith.maximumf %28, %29 : vector<16x128xf32>
    %31 = arith.truncf %30 : vector<16x128xf32> to vector<16x128xbf16>
    %c3 = arith.constant 3 : index
    %c0_22 = arith.constant 0 : index
    %c0_23 = arith.constant 0 : index
    %32 = vector.load %arg2[%c3, %c0_22, %c0_23] : memref<5x128x128xbf16, #tpu.memory_space<vmem>>, vector<1x128x128xbf16>
    %33 = vector.shape_cast %32 : vector<1x128x128xbf16> to vector<128x128xbf16>
    %cst_24 = arith.constant dense<0.000000e+00> : vector<16x128xf32>
    %34 = tpu.matmul %31, %33, %cst_24 {dimension_numbers = #tpu.dot_dimension_numbers<[1], [0], [0], [1], [0, 0, 1, 1], [], []>} : vector<16x128xbf16>, vector<128x128xbf16>, vector<16x128xf32> -> vector<16x128xf32>
    %c3_25 = arith.constant 3 : index
    %c0_26 = arith.constant 0 : index
    %c0_27 = arith.constant 0 : index
    %35 = vector.load %arg3[%c3_25, %c0_26, %c0_27] : memref<5x1x128xf32, #tpu.memory_space<vmem>>, vector<1x1x128xf32>
    %36 = vector.shape_cast %35 : vector<1x1x128xf32> to vector<1x128xf32>
    %37 = vector.broadcast %36 : vector<1x128xf32> to vector<16x128xf32>
    %38 = arith.addf %34, %37 : vector<16x128xf32>
    %cst_28 = arith.constant 0.000000e+00 : f32
    %39 = vector.broadcast %cst_28 : f32 to vector<16x128xf32>
    %40 = arith.maximumf %38, %39 : vector<16x128xf32>
    %41 = arith.truncf %40 : vector<16x128xf32> to vector<16x128xbf16>
    %c4 = arith.constant 4 : index
    %c0_29 = arith.constant 0 : index
    %c0_30 = arith.constant 0 : index
    %42 = vector.load %arg2[%c4, %c0_29, %c0_30] : memref<5x128x128xbf16, #tpu.memory_space<vmem>>, vector<1x128x128xbf16>
    %43 = vector.shape_cast %42 : vector<1x128x128xbf16> to vector<128x128xbf16>
    %cst_31 = arith.constant dense<0.000000e+00> : vector<16x128xf32>
    %44 = tpu.matmul %41, %43, %cst_31 {dimension_numbers = #tpu.dot_dimension_numbers<[1], [0], [0], [1], [0, 0, 1, 1], [], []>} : vector<16x128xbf16>, vector<128x128xbf16>, vector<16x128xf32> -> vector<16x128xf32>
    %c4_32 = arith.constant 4 : index
    %c0_33 = arith.constant 0 : index
    %c0_34 = arith.constant 0 : index
    %45 = vector.load %arg3[%c4_32, %c0_33, %c0_34] : memref<5x1x128xf32, #tpu.memory_space<vmem>>, vector<1x1x128xf32>
    %46 = vector.shape_cast %45 : vector<1x1x128xf32> to vector<1x128xf32>
    %47 = vector.broadcast %46 : vector<1x128xf32> to vector<16x128xf32>
    %48 = arith.addf %44, %47 : vector<16x128xf32>
    %49 = arith.truncf %48 : vector<16x128xf32> to vector<16x128xbf16>
    %c0_35 = arith.constant 0 : index
    %c0_36 = arith.constant 0 : index
    %50 = vector.load %arg4[%c0_35, %c0_36] : memref<16x128xbf16, #tpu.memory_space<vmem>>, vector<16x128xbf16>
    tpu.vector_store %arg4[%c0_35, %c0_36], %49 {strides = array<i32>} : memref<16x128xbf16, #tpu.memory_space<vmem>>, vector<16x128xbf16>,
    return
  }
  func.func @transform_0(%arg0: i32) -> (i32, i32) {
    %c0_i32 = arith.constant 0 : i32
    %c0_i32_0 = arith.constant 0 : i32
    return %arg0, %c0_i32 : i32, i32
  }
  func.func @transform_1(%arg0: i32) -> (i32, i32, i32) {
    %c0_i32 = arith.constant 0 : i32
    %c0_i32_0 = arith.constant 0 : i32
    %c0_i32_1 = arith.constant 0 : i32
    %c0_i32_2 = arith.constant 0 : i32
    return %c0_i32, %c0_i32_0, %c0_i32_1 : i32, i32, i32
  }
  func.func @transform_2(%arg0: i32) -> (i32, i32, i32) {
    %c0_i32 = arith.constant 0 : i32
    %c0_i32_0 = arith.constant 0 : i32
    %c0_i32_1 = arith.constant 0 : i32
    %c0_i32_2 = arith.constant 0 : i32
    return %c0_i32, %c0_i32_0, %c0_i32_1 : i32, i32, i32
  }
  func.func @transform_3(%arg0: i32) -> (i32, i32) {
    %c0_i32 = arith.constant 0 : i32
    %c0_i32_0 = arith.constant 0 : i32
    return %arg0, %c0_i32 : i32, i32
  }
}

</mosaic_0001>

<llo_original>
// kernel: _mlp_forward_packed.1
$region0: #{_mlp_forward_packed.1}
  #allocation0 [shape = 'u32[]', space=smem, size = 0x4, offset = 0x4, fixed_abs, tag = 'smem constant byte address 0x4 - core index']
  #allocation1 [shape = 'u32[144,128]{1,0:T(1,128)}', space=vmem, size = 0x12000, scoped, tag = 'internal scratch']
  %s0 = inlined_call_operand.vmem [shape: f32[16,16], index: 0, kind: input, shape index: {}]
  %s1 = inlined_call_operand.hbm [shape: bf16[5,128,128], index: 1, kind: input, shape index: {}]
  %s2 = inlined_call_operand.vmem [shape: f32[5,1,128], index: 2, kind: input, shape index: {}]
  %s3 = inlined_call_operand.vmem [shape: bf16[16,128], index: 3, kind: output, shape index: {}]
  %s4 = sld [smem:[#allocation0]]
  $region26: #{_mlp_forward_packed.1} parent=0
    _
  %s6 = ssub.s32 1, %s4
  %s7 = scalar_select 0, %s6, %s4
  $region1: #{_mlp_forward_packed.1} parent=0
    #allocation2 [shape = 'u8[163840]{0}', space=vmem, size = 0x28000, scoped, tag = 'input window, operand 1, single buffered']
    #allocation3 [shape = 's32[1]{0}', space=sflag, size = 0x4, scoped, tag = 'scoped memory for _mlp_forward_packed.1']
    %8 = vsyncpa [#allocation3], 0
    // Predicated region
    $region2: #{_mlp_forward_packed.1} parent=1 // pred_check
      _
    $region3: #{_mlp_forward_packed.1} parent=1 // pred_check_branch
      %10 = sbr.rel (0) target = $region5
    $region4: #{_mlp_forward_packed.1} parent=1 // pred_region
      _
    $region5: #{_mlp_forward_packed.1} parent=1 // pred_fallthru
      _
    // Predicated region
    $region6: #{_mlp_forward_packed.1} parent=1 // pred_check
      _
    $region7: #{_mlp_forward_packed.1} parent=1 // pred_check_branch
      %12 = sbr.rel (0) target = $region9
    $region8: #{_mlp_forward_packed.1} parent=1 // pred_region
      %s14 = ssub.s32 5120, 5120
      %15 = vsyncadd [#allocation3], %s14
      %s16 = sshll.u32 [#allocation2], 4
      %s17 = int_to_ptr.vmem [resolvable:$true] %s16
      %22 = dma.hbm_to_vmem [thread:$0]  %s1, 5120, %s17, [#allocation3], 64, 64, 4
    $region9: #{_mlp_forward_packed.1} parent=1 // pred_fallthru
      _
    // Predicated region
    $region10: #{_mlp_forward_packed.1} parent=1 // pred_check
      _
    $region11: #{_mlp_forward_packed.1} parent=1 // pred_check_branch
      %24 = sbr.rel (0) target = $region13
    $region12: #{_mlp_forward_packed.1} parent=1 // pred_region
      _
    $region13: #{_mlp_forward_packed.1} parent=1 // pred_fallthru
      _
    // Predicated region
    $region14: #{_mlp_forward_packed.1} parent=1 // pred_check
      _
    $region15: #{_mlp_forward_packed.1} parent=1 // pred_check_branch
      %26 = sbr.rel (0) target = $region17
    $region16: #{_mlp_forward_packed.1} parent=1 // pred_region
      %27 = dma.done [#allocation3], 5120
    $region17: #{_mlp_forward_packed.1} parent=1 // pred_fallthru
      _
    %v29 = vld [vmem:[%s0] sm:$0xff]
    %v30 = vld [vmem:[%s0 + $0x8] sm:$0xff]
    %v31 = vpack.c.bf16 %v30, %v29
    %v32 = vld [vmem:[#allocation2] sm:$0xf]
    %v33 = vld [vmem:[#allocation2 + $0x4] sm:$0xf]
    %v34 = vld [vmem:[%s2] sm:$0x1]
    %v36 = vlaneseq
    %v37 = vshrl.u32 %v36, 7
    %v38 = vsub.s32 0, %v37
    %v39 = vrot.slane %v34, %v38
    %v43 = vunpack.c.l.b16 %v32
    %v44 = vunpack.c.l.b16 %v33
    %v45 = vpack.c.b16 %v44, %v43
    %vm47 = vcmask 130048
    %v49 = vsel %vm47, %v31, 0
    %51 = vmatprep.subr.bf16.mxu0 0
    %52 = vmatpush1.bf16.msra.mxu0 %v45
    %53 = vmatprep.subr.bf16.mxu0 0
    %54 = vmatpush1.bf16.msra.mxu0 0
    %55 = vmatprep.subr.bf16.mxu0 0
    %56 = vmatpush1.bf16.msra.mxu0 0
    %57 = vmatprep.subr.bf16.mxu0 0
    %58 = vmatpush1.bf16.msra.mxu0 0
    %59 = vmatprep.subr.bf16.mxu0 0
    %60 = vmatpush1.bf16.msra.mxu0 0
    %61 = vmatprep.subr.bf16.mxu0 0
    %62 = vmatpush1.bf16.msra.mxu0 0
    %63 = vmatprep.subr.bf16.mxu0 0
    %64 = vmatpush1.bf16.msra.mxu0 0
    %65 = vmatprep.subr.bf16.mxu0 0
    %66 = vmatpush1.bf16.msra.mxu0 0
    %67 = vmatprep.subr.bf16.mxu0 0
    %68 = vmatpush1.bf16.msra.mxu0 0
    %69 = vmatprep.subr.bf16.mxu0 0
    %70 = vmatpush1.bf16.msra.mxu0 0
    %71 = vmatprep.subr.bf16.mxu0 0
    %72 = vmatpush1.bf16.msra.mxu0 0
    %73 = vmatprep.subr.bf16.mxu0 0
    %74 = vmatpush1.bf16.msra.mxu0 0
    %75 = vmatprep.subr.bf16.mxu0 0
    %76 = vmatpush1.bf16.msra.mxu0 0
    %77 = vmatprep.subr.bf16.mxu0 0
    %78 = vmatpush1.bf16.msra.mxu0 0
    %79 = vmatprep.subr.bf16.mxu0 0
    %80 = vmatpush1.bf16.msra.mxu0 0
    %81 = vmatprep.subr.bf16.mxu0 0
    %82 = vmatpush1.bf16.msra.mxu0 0
    %83 = vmatprep.mubr.bf16.mxu0 0
    %84 = vmatmul.mubr.bf16.gmra.mrb[0].mxu0 %v49
    %v85 = vpop.f32.mrb[0].mxu0
    %v86 = vadd.f32 %v39, %v85
    %v87 = vpop.f32.mrb[0].mxu0
    %v88 = vpop.f32.mrb[0].mxu0
    %v89 = vadd.f32 %v39, %v88
    %v90 = vpop.f32.mrb[0].mxu0
    %91 = vdwg.mxu0
    %v92 = vmax.f32 %v86, 0.0
    %v93 = vmax.f32 %v89, 0.0
    %v94 = vpack.c.bf16 %v93, %v92
    %s95 = scalar_lea.vmem [#allocation2], 64
    %v96 = vld [vmem:[%s95] sm:$0xf]
    %v97 = vld [vmem:[%s95 + $0x4] sm:$0xf]
    %v98 = vld [vmem:[%s95 + $0x8] sm:$0xf]
    %v99 = vld [vmem:[%s95 + $0xc] sm:$0xf]
    %v100 = vld [vmem:[%s95 + $0x10] sm:$0xf]
    %v101 = vld [vmem:[%s95 + $0x14] sm:$0xf]
    %v102 = vld [vmem:[%s95 + $0x18] sm:$0xf]
    %v103 = vld [vmem:[%s95 + $0x1c] sm:$0xf]
    %v104 = vld [vmem:[%s95 + $0x20] sm:$0xf]
    %v105 = vld [vmem:[%s95 + $0x24] sm:$0xf]
    %v106 = vld [vmem:[%s95 + $0x28] sm:$0xf]
    %v107 = vld [vmem:[%s95 + $0x2c] sm:$0xf]
    %v108 = vld [vmem:[%s95 + $0x30] sm:$0xf]
    %v109 = vld [vmem:[%s95 + $0x34] sm:$0xf]
    %v110 = vld [vmem:[%s95 + $0x38] sm:$0xf]
    %v111 = vld [vmem:[%s95 + $0x3c] sm:$0xf]
    %s112 = scalar_lea.vmem %s2, 1
    %v113 = vld [vmem:[%s112] sm:$0x1]
    %v115 = vlaneseq
    %v116 = vshrl.u32 %v115, 7
    %v117 = vsub.s32 0, %v116
    %v118 = vrot.slane %v113, %v117
    %v136 = vunpack.c.l.b16 %v96
    %v137 = vunpack.c.l.b16 %v97
    %v138 = vunpack.c.l.b16 %v98
    %v139 = vunpack.c.l.b16 %v99
    %v140 = vunpack.c.l.b16 %v100
    %v141 = vunpack.c.l.b16 %v101
    %v142 = vunpack.c.l.b16 %v102
    %v143 = vunpack.c.l.b16 %v103
    %v144 = vunpack.c.l.b16 %v104
    %v145 = vunpack.c.l.b16 %v105
    %v146 = vunpack.c.l.b16 %v106
    %v147 = vunpack.c.l.b16 %v107
    %v148 = vunpack.c.l.b16 %v108
    %v149 = vunpack.c.l.b16 %v109
    %v150 = vunpack.c.l.b16 %v110
    %v151 = vunpack.c.l.b16 %v111
    %v152 = vpack.c.b16 %v137, %v136
    %v153 = vpack.c.b16 %v139, %v138
    %v154 = vpack.c.b16 %v141, %v140
    %v155 = vpack.c.b16 %v143, %v142
    %v156 = vpack.c.b16 %v145, %v144
    %v157 = vpack.c.b16 %v147, %v146
    %v158 = vpack.c.b16 %v149, %v148
    %v159 = vpack.c.b16 %v151, %v150
    %168 = vmatprep.subr.bf16.mxu0 0
    %169 = vmatpush1.bf16.msra.mxu0 %v152
    %170 = vmatprep.subr.bf16.mxu0 0
    %171 = vmatpush1.bf16.msra.mxu0 %v153
    %172 = vmatprep.subr.bf16.mxu0 0
    %173 = vmatpush1.bf16.msra.mxu0 %v154
    %174 = vmatprep.subr.bf16.mxu0 0
    %175 = vmatpush1.bf16.msra.mxu0 %v155
    %176 = vmatprep.subr.bf16.mxu0 0
    %177 = vmatpush1.bf16.msra.mxu0 %v156
    %178 = vmatprep.subr.bf16.mxu0 0
    %179 = vmatpush1.bf16.msra.mxu0 %v157
    %180 = vmatprep.subr.bf16.mxu0 0
    %181 = vmatpush1.bf16.msra.mxu0 %v158
    %182 = vmatprep.subr.bf16.mxu0 0
    %183 = vmatpush1.bf16.msra.mxu0 %v159
    %184 = vmatprep.subr.bf16.mxu0 0
    %185 = vmatpush1.bf16.msra.mxu0 0
    %186 = vmatprep.subr.bf16.mxu0 0
    %187 = vmatpush1.bf16.msra.mxu0 0
    %188 = vmatprep.subr.bf16.mxu0 0
    %189 = vmatpush1.bf16.msra.mxu0 0
    %190 = vmatprep.subr.bf16.mxu0 0
    %191 = vmatpush1.bf16.msra.mxu0 0
    %192 = vmatprep.subr.bf16.mxu0 0
    %193 = vmatpush1.bf16.msra.mxu0 0
    %194 = vmatprep.subr.bf16.mxu0 0
    %195 = vmatpush1.bf16.msra.mxu0 0
    %196 = vmatprep.subr.bf16.mxu0 0
    %197 = vmatpush1.bf16.msra.mxu0 0
    %198 = vmatprep.subr.bf16.mxu0 0
    %199 = vmatpush1.bf16.msra.mxu0 0
    %200 = vmatprep.mubr.bf16.mxu0 0
    %201 = vmatmul.mubr.bf16.gmra.mrb[0].mxu0 %v94
    %v202 = vpop.f32.mrb[0].mxu0
    %v203 = vadd.f32 %v118, %v202
    %v204 = vpop.f32.mrb[0].mxu0
    %v205 = vpop.f32.mrb[0].mxu0
    %v206 = vadd.f32 %v118, %v205
    %v207 = vpop.f32.mrb[0].mxu0
    %208 = vdwg.mxu0
    %v209 = vmax.f32 %v203, 0.0
    %v210 = vmax.f32 %v206, 0.0
    %v211 = vpack.c.bf16 %v210, %v209
    %s212 = scalar_lea.vmem [#allocation2], 128
    %v213 = vld [vmem:[%s212] sm:$0xf]
    %v214 = vld [vmem:[%s212 + $0x4] sm:$0xf]
    %v215 = vld [vmem:[%s212 + $0x8] sm:$0xf]
    %v216 = vld [vmem:[%s212 + $0xc] sm:$0xf]
    %v217 = vld [vmem:[%s212 + $0x10] sm:$0xf]
    %v218 = vld [vmem:[%s212 + $0x14] sm:$0xf]
    %v219 = vld [vmem:[%s212 + $0x18] sm:$0xf]
    %v220 = vld [vmem:[%s212 + $0x1c] sm:$0xf]
    %v221 = vld [vmem:[%s212 + $0x20] sm:$0xf]
    %v222 = vld [vmem:[%s212 + $0x24] sm:$0xf]
    %v223 = vld [vmem:[%s212 + $0x28] sm:$0xf]
    %v224 = vld [vmem:[%s212 + $0x2c] sm:$0xf]
    %v225 = vld [vmem:[%s212 + $0x30] sm:$0xf]
    %v226 = vld [vmem:[%s212 + $0x34] sm:$0xf]
    %v227 = vld [vmem:[%s212 + $0x38] sm:$0xf]
    %v228 = vld [vmem:[%s212 + $0x3c] sm:$0xf]
    %s229 = scalar_lea.vmem %s2, 2
    %v230 = vld [vmem:[%s229] sm:$0x1]
    %v232 = vlaneseq
    %v233 = vshrl.u32 %v232, 7
    %v234 = vsub.s32 0, %v233
    %v235 = vrot.slane %v230, %v234
    %v253 = vunpack.c.l.b16 %v213
    %v254 = vunpack.c.l.b16 %v214
    %v255 = vunpack.c.l.b16 %v215
    %v256 = vunpack.c.l.b16 %v216
    %v257 = vunpack.c.l.b16 %v217
    %v258 = vunpack.c.l.b16 %v218
    %v259 = vunpack.c.l.b16 %v219
    %v260 = vunpack.c.l.b16 %v220
    %v261 = vunpack.c.l.b16 %v221
    %v262 = vunpack.c.l.b16 %v222
    %v263 = vunpack.c.l.b16 %v223
    %v264 = vunpack.c.l.b16 %v224
    %v265 = vunpack.c.l.b16 %v225
    %v266 = vunpack.c.l.b16 %v226
    %v267 = vunpack.c.l.b16 %v227
    %v268 = vunpack.c.l.b16 %v228
    %v269 = vpack.c.b16 %v254, %v253
    %v270 = vpack.c.b16 %v256, %v255
    %v271 = vpack.c.b16 %v258, %v257
    %v272 = vpack.c.b16 %v260, %v259
    %v273 = vpack.c.b16 %v262, %v261
    %v274 = vpack.c.b16 %v264, %v263
    %v275 = vpack.c.b16 %v266, %v265
    %v276 = vpack.c.b16 %v268, %v267
    %285 = vmatprep.subr.bf16.mxu0 0
    %286 = vmatpush1.bf16.msra.mxu0 %v269
    %287 = vmatprep.subr.bf16.mxu0 0
    %288 = vmatpush1.bf16.msra.mxu0 %v270
    %289 = vmatprep.subr.bf16.mxu0 0
    %290 = vmatpush1.bf16.msra.mxu0 %v271
    %291 = vmatprep.subr.bf16.mxu0 0
    %292 = vmatpush1.bf16.msra.mxu0 %v272
    %293 = vmatprep.subr.bf16.mxu0 0
    %294 = vmatpush1.bf16.msra.mxu0 %v273
    %295 = vmatprep.subr.bf16.mxu0 0
    %296 = vmatpush1.bf16.msra.mxu0 %v274
    %297 = vmatprep.subr.bf16.mxu0 0
    %298 = vmatpush1.bf16.msra.mxu0 %v275
    %299 = vmatprep.subr.bf16.mxu0 0
    %300 = vmatpush1.bf16.msra.mxu0 %v276
    %301 = vmatprep.subr.bf16.mxu0 0
    %302 = vmatpush1.bf16.msra.mxu0 0
    %303 = vmatprep.subr.bf16.mxu0 0
    %304 = vmatpush1.bf16.msra.mxu0 0
    %305 = vmatprep.subr.bf16.mxu0 0
    %306 = vmatpush1.bf16.msra.mxu0 0
    %307 = vmatprep.subr.bf16.mxu0 0
    %308 = vmatpush1.bf16.msra.mxu0 0
    %309 = vmatprep.subr.bf16.mxu0 0
    %310 = vmatpush1.bf16.msra.mxu0 0
    %311 = vmatprep.subr.bf16.mxu0 0
    %312 = vmatpush1.bf16.msra.mxu0 0
    %313 = vmatprep.subr.bf16.mxu0 0
    %314 = vmatpush1.bf16.msra.mxu0 0
    %315 = vmatprep.subr.bf16.mxu0 0
    %316 = vmatpush1.bf16.msra.mxu0 0
    %317 = vmatprep.mubr.bf16.mxu0 0
    %318 = vmatmul.mubr.bf16.gmra.mrb[0].mxu0 %v211
    %v319 = vpop.f32.mrb[0].mxu0
    %v320 = vadd.f32 %v235, %v319
    %v321 = vpop.f32.mrb[0].mxu0
    %v322 = vpop.f32.mrb[0].mxu0
    %v323 = vadd.f32 %v235, %v322
    %v324 = vpop.f32.mrb[0].mxu0
    %325 = vdwg.mxu0
    %v326 = vmax.f32 %v320, 0.0
    %v327 = vmax.f32 %v323, 0.0
    %v328 = vpack.c.bf16 %v327, %v326
    %s329 = scalar_lea.vmem [#allocation2], 192
    %v330 = vld [vmem:[%s329] sm:$0xf]
    %v331 = vld [vmem:[%s329 + $0x4] sm:$0xf]
    %v332 = vld [vmem:[%s329 + $0x8] sm:$0xf]
    %v333 = vld [vmem:[%s329 + $0xc] sm:$0xf]
    %v334 = vld [vmem:[%s329 + $0x10] sm:$0xf]
    %v335 = vld [vmem:[%s329 + $0x14] sm:$0xf]
    %v336 = vld [vmem:[%s329 + $0x18] sm:$0xf]
    %v337 = vld [vmem:[%s329 + $0x1c] sm:$0xf]
    %v338 = vld [vmem:[%s329 + $0x20] sm:$0xf]
    %v339 = vld [vmem:[%s329 + $0x24] sm:$0xf]
    %v340 = vld [vmem:[%s329 + $0x28] sm:$0xf]
    %v341 = vld [vmem:[%s329 + $0x2c] sm:$0xf]
    %v342 = vld [vmem:[%s329 + $0x30] sm:$0xf]
    %v343 = vld [vmem:[%s329 + $0x34] sm:$0xf]
    %v344 = vld [vmem:[%s329 + $0x38] sm:$0xf]
    %v345 = vld [vmem:[%s329 + $0x3c] sm:$0xf]
    %s346 = scalar_lea.vmem %s2, 3
    %v347 = vld [vmem:[%s346] sm:$0x1]
    %v349 = vlaneseq
    %v350 = vshrl.u32 %v349, 7
    %v351 = vsub.s32 0, %v350
    %v352 = vrot.slane %v347, %v351
    %v370 = vunpack.c.l.b16 %v330
    %v371 = vunpack.c.l.b16 %v331
    %v372 = vunpack.c.l.b16 %v332
    %v373 = vunpack.c.l.b16 %v333
    %v374 = vunpack.c.l.b16 %v334
    %v375 = vunpack.c.l.b16 %v335
    %v376 = vunpack.c.l.b16 %v336
    %v377 = vunpack.c.l.b16 %v337
    %v378 = vunpack.c.l.b16 %v338
    %v379 = vunpack.c.l.b16 %v339
    %v380 = vunpack.c.l.b16 %v340
    %v381 = vunpack.c.l.b16 %v341
    %v382 = vunpack.c.l.b16 %v342
    %v383 = vunpack.c.l.b16 %v343
    %v384 = vunpack.c.l.b16 %v344
    %v385 = vunpack.c.l.b16 %v345
    %v386 = vpack.c.b16 %v371, %v370
    %v387 = vpack.c.b16 %v373, %v372
    %v388 = vpack.c.b16 %v375, %v374
    %v389 = vpack.c.b16 %v377, %v376
    %v390 = vpack.c.b16 %v379, %v378
    %v391 = vpack.c.b16 %v381, %v380
    %v392 = vpack.c.b16 %v383, %v382
    %v393 = vpack.c.b16 %v385, %v384
    %402 = vmatprep.subr.bf16.mxu0 0
    %403 = vmatpush1.bf16.msra.mxu0 %v386
    %404 = vmatprep.subr.bf16.mxu0 0
    %405 = vmatpush1.bf16.msra.mxu0 %v387
    %406 = vmatprep.subr.bf16.mxu0 0
    %407 = vmatpush1.bf16.msra.mxu0 %v388
    %408 = vmatprep.subr.bf16.mxu0 0
    %409 = vmatpush1.bf16.msra.mxu0 %v389
    %410 = vmatprep.subr.bf16.mxu0 0
    %411 = vmatpush1.bf16.msra.mxu0 %v390
    %412 = vmatprep.subr.bf16.mxu0 0
    %413 = vmatpush1.bf16.msra.mxu0 %v391
    %414 = vmatprep.subr.bf16.mxu0 0
    %415 = vmatpush1.bf16.msra.mxu0 %v392
    %416 = vmatprep.subr.bf16.mxu0 0
    %417 = vmatpush1.bf16.msra.mxu0 %v393
    %418 = vmatprep.subr.bf16.mxu0 0
    %419 = vmatpush1.bf16.msra.mxu0 0
    %420 = vmatprep.subr.bf16.mxu0 0
    %421 = vmatpush1.bf16.msra.mxu0 0
    %422 = vmatprep.subr.bf16.mxu0 0
    %423 = vmatpush1.bf16.msra.mxu0 0
    %424 = vmatprep.subr.bf16.mxu0 0
    %425 = vmatpush1.bf16.msra.mxu0 0
    %426 = vmatprep.subr.bf16.mxu0 0
    %427 = vmatpush1.bf16.msra.mxu0 0
    %428 = vmatprep.subr.bf16.mxu0 0
    %429 = vmatpush1.bf16.msra.mxu0 0
    %430 = vmatprep.subr.bf16.mxu0 0
    %431 = vmatpush1.bf16.msra.mxu0 0
    %432 = vmatprep.subr.bf16.mxu0 0
    %433 = vmatpush1.bf16.msra.mxu0 0
    %434 = vmatprep.mubr.bf16.mxu0 0
    %435 = vmatmul.mubr.bf16.gmra.mrb[0].mxu0 %v328
    %v436 = vpop.f32.mrb[0].mxu0
    %v437 = vadd.f32 %v352, %v436
    %v438 = vpop.f32.mrb[0].mxu0
    %v439 = vpop.f32.mrb[0].mxu0
    %v440 = vadd.f32 %v352, %v439
    %v441 = vpop.f32.mrb[0].mxu0
    %442 = vdwg.mxu0
    %v443 = vmax.f32 %v437, 0.0
    %v444 = vmax.f32 %v440, 0.0
    %v445 = vpack.c.bf16 %v444, %v443
    %s446 = scalar_lea.vmem [#allocation2], 256
    %v447 = vld [vmem:[%s446] sm:$0xf]
    %v448 = vld [vmem:[%s446 + $0x4] sm:$0xf]
    %v449 = vld [vmem:[%s446 + $0x8] sm:$0xf]
    %v450 = vld [vmem:[%s446 + $0xc] sm:$0xf]
    %v451 = vld [vmem:[%s446 + $0x10] sm:$0xf]
    %v452 = vld [vmem:[%s446 + $0x14] sm:$0xf]
    %v453 = vld [vmem:[%s446 + $0x18] sm:$0xf]
    %v454 = vld [vmem:[%s446 + $0x1c] sm:$0xf]
    %v455 = vld [vmem:[%s446 + $0x20] sm:$0xf]
    %v456 = vld [vmem:[%s446 + $0x24] sm:$0xf]
    %v457 = vld [vmem:[%s446 + $0x28] sm:$0xf]
    %v458 = vld [vmem:[%s446 + $0x2c] sm:$0xf]
    %v459 = vld [vmem:[%s446 + $0x30] sm:$0xf]
    %v460 = vld [vmem:[%s446 + $0x34] sm:$0xf]
    %v461 = vld [vmem:[%s446 + $0x38] sm:$0xf]
    %v462 = vld [vmem:[%s446 + $0x3c] sm:$0xf]
    %s463 = scalar_lea.vmem %s2, 4
    %v464 = vld [vmem:[%s463] sm:$0x1]
    %v466 = vlaneseq
    %v467 = vshrl.u32 %v466, 7
    %v468 = vsub.s32 0, %v467
    %v469 = vrot.slane %v464, %v468
    %v487 = vunpack.c.l.b16 %v447
    %v488 = vunpack.c.l.b16 %v448
    %v489 = vunpack.c.l.b16 %v449
    %v490 = vunpack.c.l.b16 %v450
    %v491 = vunpack.c.l.b16 %v451
    %v492 = vunpack.c.l.b16 %v452
    %v493 = vunpack.c.l.b16 %v453
    %v494 = vunpack.c.l.b16 %v454
    %v495 = vunpack.c.l.b16 %v455
    %v496 = vunpack.c.l.b16 %v456
    %v497 = vunpack.c.l.b16 %v457
    %v498 = vunpack.c.l.b16 %v458
    %v499 = vunpack.c.l.b16 %v459
    %v500 = vunpack.c.l.b16 %v460
    %v501 = vunpack.c.l.b16 %v461
    %v502 = vunpack.c.l.b16 %v462
    %v503 = vpack.c.b16 %v488, %v487
    %v504 = vpack.c.b16 %v490, %v489
    %v505 = vpack.c.b16 %v492, %v491
    %v506 = vpack.c.b16 %v494, %v493
    %v507 = vpack.c.b16 %v496, %v495
    %v508 = vpack.c.b16 %v498, %v497
    %v509 = vpack.c.b16 %v500, %v499
    %v510 = vpack.c.b16 %v502, %v501
    %519 = vmatprep.subr.bf16.mxu0 0
    %520 = vmatpush1.bf16.msra.mxu0 %v503
    %521 = vmatprep.subr.bf16.mxu0 0
    %522 = vmatpush1.bf16.msra.mxu0 %v504
    %523 = vmatprep.subr.bf16.mxu0 0
    %524 = vmatpush1.bf16.msra.mxu0 %v505
    %525 = vmatprep.subr.bf16.mxu0 0
    %526 = vmatpush1.bf16.msra.mxu0 %v506
    %527 = vmatprep.subr.bf16.mxu0 0
    %528 = vmatpush1.bf16.msra.mxu0 %v507
    %529 = vmatprep.subr.bf16.mxu0 0
    %530 = vmatpush1.bf16.msra.mxu0 %v508
    %531 = vmatprep.subr.bf16.mxu0 0
    %532 = vmatpush1.bf16.msra.mxu0 %v509
    %533 = vmatprep.subr.bf16.mxu0 0
    %534 = vmatpush1.bf16.msra.mxu0 %v510
    %535 = vmatprep.subr.bf16.mxu0 0
    %536 = vmatpush1.bf16.msra.mxu0 0
    %537 = vmatprep.subr.bf16.mxu0 0
    %538 = vmatpush1.bf16.msra.mxu0 0
    %539 = vmatprep.subr.bf16.mxu0 0
    %540 = vmatpush1.bf16.msra.mxu0 0
    %541 = vmatprep.subr.bf16.mxu0 0
    %542 = vmatpush1.bf16.msra.mxu0 0
    %543 = vmatprep.subr.bf16.mxu0 0
    %544 = vmatpush1.bf16.msra.mxu0 0
    %545 = vmatprep.subr.bf16.mxu0 0
    %546 = vmatpush1.bf16.msra.mxu0 0
    %547 = vmatprep.subr.bf16.mxu0 0
    %548 = vmatpush1.bf16.msra.mxu0 0
    %549 = vmatprep.subr.bf16.mxu0 0
    %550 = vmatpush1.bf16.msra.mxu0 0
    %551 = vmatprep.mubr.bf16.mxu0 0
    %552 = vmatmul.mubr.bf16.gmra.mrb[0].mxu0 %v445
    %v553 = vpop.f32.mrb[0].mxu0
    %v554 = vadd.f32 %v469, %v553
    %v555 = vpop.f32.mrb[0].mxu0
    %v556 = vpop.f32.mrb[0].mxu0
    %v557 = vadd.f32 %v469, %v556
    %v558 = vpop.f32.mrb[0].mxu0
    %559 = vdwg.mxu0
    %v560 = vpack.c.bf16 %v557, %v554
    %v562 = vunpack.c.l.b16 %v560
    %v563 = vunpack.c.h.b16 %v560
    %v564 = vpack.c.b16 %v562, %v562
    %v565 = vpack.c.b16 %v563, %v563
    %568 = vst [vmem:[%s3] sm:$0xf] %v564
    %569 = vst [vmem:[%s3 + $0x4] sm:$0xf] %v565
    // Predicated region
    $region18: #{_mlp_forward_packed.1} parent=1 // pred_check
      _
    $region19: #{_mlp_forward_packed.1} parent=1 // pred_check_branch
      %571 = sbr.rel (0) target = $region21
    $region20: #{_mlp_forward_packed.1} parent=1 // pred_region
      _
    $region21: #{_mlp_forward_packed.1} parent=1 // pred_fallthru
      _
    // Predicated region
    $region22: #{_mlp_forward_packed.1} parent=1 // pred_check
      _
    $region23: #{_mlp_forward_packed.1} parent=1 // pred_check_branch
      %573 = sbr.rel (0) target = $region25
    $region24: #{_mlp_forward_packed.1} parent=1 // pred_region
      _
    $region25: #{_mlp_forward_packed.1} parent=1 // pred_fallthru
      _
    %574 = vsyncpa [#allocation3], 1

</llo_original>
